<compile_context>
chip_gen: v5e
topology: v5e:2x2
jax: 0.10.0
libtpu: 0.0.40
codegen_flags: <defaults>
</compile_context>

<pallas_src>
import jax
import jax.numpy as jnp
from jax.experimental import pallas as pl
from jax.experimental.pallas import tpu as pltpu


# ---------------------------------------------------------------------------
# Kernels
# ---------------------------------------------------------------------------
def _gin_conv_kernel(ahat_ref, x_ref, wa_ref, ba_ref, wb_ref, bb_ref,
                     out_ref, acc_ref):
    """One GINConv + post-conv ReLU for a tile of node rows.

    grid = (row_tiles, col_tiles); the column axis is the aggregation reduction.
    acc_ref accumulates (Ahat_tile @ x_tile) in f32; the MLP epilogue runs on the
    last reduction step only.
    """
    k = pl.program_id(1)

    @pl.when(k == 0)
    def _():
        acc_ref[...] = jnp.zeros_like(acc_ref)

    # Aggregation: bf16 MXU matmul, f32 accumulate.
    acc_ref[...] += jnp.dot(ahat_ref[...], x_ref[...],
                            preferred_element_type=jnp.float32)

    @pl.when(k == pl.num_programs(1) - 1)
    def _():
        agg = acc_ref[...].astype(jnp.bfloat16)
        h = jnp.dot(agg, wa_ref[...], preferred_element_type=jnp.float32)
        h = jnp.maximum(h + ba_ref[...], 0.0).astype(jnp.bfloat16)
        h = jnp.dot(h, wb_ref[...], preferred_element_type=jnp.float32)
        h = jnp.maximum(h + bb_ref[...], 0.0)          # F.relu after the conv
        out_ref[...] = h.astype(out_ref.dtype)


def _pool_fc_kernel(pool_ref, h_ref, wfc_ref, bfc_ref, out_ref, acc_ref):
    """global_add_pool (segment-sum over node tiles) + fc + ReLU."""
    k = pl.program_id(0)

    @pl.when(k == 0)
    def _():
        acc_ref[...] = jnp.zeros_like(acc_ref)

    acc_ref[...] += jnp.dot(pool_ref[...], h_ref[...],
                            preferred_element_type=jnp.float32)

    @pl.when(k == pl.num_programs(0) - 1)
    def _():
        p = acc_ref[...].astype(jnp.bfloat16)
        out = jnp.dot(p, wfc_ref[...], preferred_element_type=jnp.float32)
        out_ref[...] = jnp.maximum(out + bfc_ref[...], 0.0)


# ---------------------------------------------------------------------------
# Wrappers
# ---------------------------------------------------------------------------
def _round_up(n, m):
    return ((n + m - 1) // m) * m


def _pad2(a, rows, cols):
    return jnp.pad(a, ((0, rows - a.shape[0]), (0, cols - a.shape[1])))


def _vmem_limit(nbytes):
    return int(min(max(int(nbytes * 1.5) + (2 << 20), 4 << 20), 64 << 20))


def _gin_conv(ahat, h_in, wa, ba, wb, bb, *, tile):
    n_pad = ahat.shape[0]
    cin = h_in.shape[1]
    hid = wa.shape[1]
    cout = wb.shape[1]
    grid = (n_pad // tile, n_pad // tile)

    footprint = (2 * tile * tile * 2            # Ahat tile (double buffered, bf16)
                 + 2 * tile * cin * 2           # feature tile
                 + 2 * (cin * hid + hid * cout) * 2 + 2 * (hid + cout) * 4  # weights/biases
                 + 2 * tile * cout * 2          # output tile
                 + tile * cin * 4)              # f32 accumulator

    return pl.pallas_call(
        _gin_conv_kernel,
        out_shape=jax.ShapeDtypeStruct((n_pad, cout), jnp.bfloat16),
        grid_spec=pltpu.PrefetchScalarGridSpec(
            num_scalar_prefetch=0,
            grid=grid,
            in_specs=[
                pl.BlockSpec((tile, tile), lambda i, k: (i, k)),   # Ahat
                pl.BlockSpec((tile, cin), lambda i, k: (k, 0)),    # node features
                pl.BlockSpec((cin, hid), lambda i, k: (0, 0)),     # W_a
                pl.BlockSpec((1, hid), lambda i, k: (0, 0)),       # b_a
                pl.BlockSpec((hid, cout), lambda i, k: (0, 0)),    # W_b
                pl.BlockSpec((1, cout), lambda i, k: (0, 0)),      # b_b
            ],
            out_specs=pl.BlockSpec((tile, cout), lambda i, k: (i, 0)),
            scratch_shapes=[pltpu.VMEM((tile, cin), jnp.float32)],
        ),
        compiler_params=pltpu.CompilerParams(
            dimension_semantics=("parallel", "arbitrary"),
            vmem_limit_bytes=_vmem_limit(footprint),
        ),
    )(ahat, h_in, wa, ba, wb, bb)


def _pool_fc(pool, h, wfc, bfc, *, tile):
    g_pad, n_pad = pool.shape
    cout = h.shape[1]
    fc_out = wfc.shape[1]
    grid = (n_pad // tile,)

    footprint = (2 * g_pad * tile * 2 + 2 * tile * cout * 2
                 + 2 * cout * fc_out * 2 + 2 * fc_out * 4
                 + g_pad * cout * 4 + 2 * g_pad * fc_out * 4)

    return pl.pallas_call(
        _pool_fc_kernel,
        out_shape=jax.ShapeDtypeStruct((g_pad, fc_out), jnp.float32),
        grid_spec=pltpu.PrefetchScalarGridSpec(
            num_scalar_prefetch=0,
            grid=grid,
            in_specs=[
                pl.BlockSpec((g_pad, tile), lambda k: (0, k)),     # pooling one-hot
                pl.BlockSpec((tile, cout), lambda k: (k, 0)),      # node embeddings
                pl.BlockSpec((cout, fc_out), lambda k: (0, 0)),    # W_fc
                pl.BlockSpec((1, fc_out), lambda k: (0, 0)),       # b_fc
            ],
            out_specs=pl.BlockSpec((g_pad, fc_out), lambda k: (0, 0)),
            scratch_shapes=[pltpu.VMEM((g_pad, cout), jnp.float32)],
        ),
        compiler_params=pltpu.CompilerParams(
            dimension_semantics=("arbitrary",),
            vmem_limit_bytes=_vmem_limit(footprint),
        ),
    )(pool, h, wfc, bfc)


def gin_forward(x, edge_index, batch, params, num_graphs):
    num_nodes, in_channels = x.shape
    hidden = params["w1a"].shape[1]
    out_channels = params["wfc"].shape[1]

    # ---- padded, lane-dense sizes ----
    tile = 128 if num_nodes <= 128 else 256
    n_pad = _round_up(num_nodes, tile)
    cin_p = _round_up(in_channels, 128)
    hid_p = _round_up(hidden, 128)
    cout_p = _round_up(out_channels, 128)
    g_pad = _round_up(num_graphs, 8)

    # ---- dense Ahat = A + (1+eps)*I (eps=0, GINConv default); bf16 is exact for
    #      small integer degrees.  PyG aggregates source->target: Ahat[dst, src] += 1.
    src, dst = edge_index[0], edge_index[1]
    adj = jnp.zeros((n_pad, n_pad), jnp.float32).at[dst, src].add(1.0)
    ahat = (adj + jnp.eye(n_pad, dtype=jnp.float32)).astype(jnp.bfloat16)

    # ---- zero-padded features & parameters (padding is inert; see top comment) ----
    x_p = _pad2(x.astype(jnp.float32), n_pad, cin_p).astype(jnp.bfloat16)

    w1a = _pad2(params["w1a"], cin_p, hid_p).astype(jnp.bfloat16)
    b1a = _pad2(params["b1a"], 1, hid_p)
    w1b = _pad2(params["w1b"], hid_p, hid_p).astype(jnp.bfloat16)
    b1b = _pad2(params["b1b"], 1, hid_p)
    w2a = _pad2(params["w2a"], hid_p, hid_p).astype(jnp.bfloat16)
    b2a = _pad2(params["b2a"], 1, hid_p)
    w2b = _pad2(params["w2b"], hid_p, cout_p).astype(jnp.bfloat16)
    b2b = _pad2(params["b2b"], 1, cout_p)
    wfc = _pad2(params["wfc"], cout_p, cout_p).astype(jnp.bfloat16)
    bfc = _pad2(params["bfc"], 1, cout_p)

    # ---- one-hot pooling matrix for global_add_pool (padded nodes map to no graph) ----
    batch_p = jnp.full((n_pad,), -1, jnp.int32).at[:num_nodes].set(batch.astype(jnp.int32))
    pool = (batch_p[None, :] == jnp.arange(g_pad, dtype=jnp.int32)[:, None]).astype(jnp.bfloat16)

    h1 = _gin_conv(ahat, x_p, w1a, b1a, w1b, b1b, tile=tile)   # conv1 + ReLU
    h2 = _gin_conv(ahat, h1, w2a, b2a, w2b, b2b, tile=tile)    # conv2 + ReLU
    out = _pool_fc(pool, h2, wfc, bfc, tile=tile)              # add-pool + fc + ReLU

    return out[:num_graphs, :out_channels]


# ---------------------------------------------------------------------------
# Params + pure-JAX reference
# ---------------------------------------------------------------------------
def init_params(key, in_channels, hidden_channels, out_channels):
    ks = jax.random.split(key, 10)

    def lin(kw, kb, fan_in, fan_out):
        bound = 1.0 / jnp.sqrt(jnp.float32(fan_in))
        w = jax.random.uniform(kw, (fan_in, fan_out), jnp.float32, -bound, bound)
        b = jax.random.uniform(kb, (1, fan_out), jnp.float32, -bound, bound)
        return w, b

    p = {}
    p["w1a"], p["b1a"] = lin(ks[0], ks[1], in_channels, hidden_channels)
    p["w1b"], p["b1b"] = lin(ks[2], ks[3], hidden_channels, hidden_channels)
    p["w2a"], p["b2a"] = lin(ks[4], ks[5], hidden_channels, hidden_channels)
    p["w2b"], p["b2b"] = lin(ks[6], ks[7], hidden_channels, out_channels)
    p["wfc"], p["bfc"] = lin(ks[8], ks[9], out_channels, out_channels)
    return p


def gin_reference(x, edge_index, batch, params, num_graphs):
    num_nodes = x.shape[0]
    src, dst = edge_index[0], edge_index[1]
    adj = jnp.zeros((num_nodes, num_nodes), jnp.float32).at[dst, src].add(1.0)
    ahat = adj + jnp.eye(num_nodes, dtype=jnp.float32)
    pool = (batch[None, :] == jnp.arange(num_graphs)[:, None]).astype(jnp.float32)

    h = ahat @ x
    h = jnp.maximum(h @ params["w1a"] + params["b1a"], 0.0)
    h = jnp.maximum(h @ params["w1b"] + params["b1b"], 0.0)
    h = ahat @ h
    h = jnp.maximum(h @ params["w2a"] + params["b2a"], 0.0)
    h = jnp.maximum(h @ params["w2b"] + params["b2b"], 0.0)
    p = pool @ h
    return jnp.maximum(p @ params["wfc"] + params["bfc"], 0.0)


# ---------------------------------------------------------------------------
if __name__ == "__main__":
    in_channels, hidden_channels, out_channels = 16, 32, 32
    num_nodes, num_graphs = 8, 2

    key = jax.random.PRNGKey(0)
    kx, kp = jax.random.split(key)

    x = jax.random.normal(kx, (num_nodes, in_channels), jnp.float32)

    # Two small graphs: nodes 0..3 a ring, nodes 4..7 a path (bidirectional edges).
    edges = [(0, 1), (1, 2), (2, 3), (3, 0),
             (4, 5), (5, 6), (6, 7)]
    src = [s for s, d in edges] + [d for s, d in edges]
    dst = [d for s, d in edges] + [s for s, d in edges]
    edge_index = jnp.array([src, dst], dtype=jnp.int32)          # [2, num_edges]
    batch = jnp.array([0, 0, 0, 0, 1, 1, 1, 1], dtype=jnp.int32)  # [num_nodes]

    params = init_params(kp, in_channels, hidden_channels, out_channels)

    out = jax.block_until_ready(gin_forward(x, edge_index, batch, params, num_graphs))
    ref = gin_reference(x, edge_index, batch, params, num_graphs)

    assert out.shape == (num_graphs, out_channels)
    # bf16 storage / f32 accumulation -> wider tolerance vs the pure-f32 reference.
    assert jnp.allclose(out, ref, atol=5e-2, rtol=5e-2), (
        f"mismatch: max abs err {float(jnp.max(jnp.abs(out - ref)))}")

    print("KERNEL_OK")
</pallas_src>

<mosaic_0001>
module attributes {stable_mosaic.version = 11 : i64} {
  func.func @_gin_conv_kernel(%arg0: i32, %arg1: i32, %arg2: memref<128x128xbf16, #tpu.memory_space<vmem>>, %arg3: memref<128x128xbf16, #tpu.memory_space<vmem>>, %arg4: memref<128x128xbf16, #tpu.memory_space<vmem>>, %arg5: memref<1x128xf32, #tpu.memory_space<vmem>>, %arg6: memref<128x128xbf16, #tpu.memory_space<vmem>>, %arg7: memref<1x128xf32, #tpu.memory_space<vmem>>, %arg8: memref<128x128xbf16, #tpu.memory_space<vmem>>, %arg9: memref<128x128xf32, #tpu.memory_space<vmem>>) attributes {dimension_semantics = [#tpu.dimension_semantics<parallel>, #tpu.dimension_semantics<arbitrary>], iteration_bounds = array<i64: 1, 1>, scalar_prefetch = 0 : i64, scratch_operands = 1 : i64, tpu.core_type = #tpu.core_type<tc>, window_params = [{transform_indices = @transform_0, window_bounds = array<i64: 128, 128>}, {transform_indices = @transform_1, window_bounds = array<i64: 128, 128>}, {pipeline_mode = #tpu.pipeline_mode<synchronous>, transform_indices = @transform_2, window_bounds = array<i64: 128, 128>}, {pipeline_mode = #tpu.pipeline_mode<synchronous>, transform_indices = @transform_3, window_bounds = array<i64: 1, 128>}, {pipeline_mode = #tpu.pipeline_mode<synchronous>, transform_indices = @transform_4, window_bounds = array<i64: 128, 128>}, {pipeline_mode = #tpu.pipeline_mode<synchronous>, transform_indices = @transform_5, window_bounds = array<i64: 1, 128>}, {transform_indices = @transform_6, window_bounds = array<i64: 128, 128>}]} {
    %c0_i32 = arith.constant 0 : i32
    %0 = arith.cmpi eq, %arg1, %c0_i32 : i32
    %1 = arith.extui %0 : i1 to i32
    %c0_i32_0 = arith.constant 0 : i32
    %2 = arith.cmpi ne, %1, %c0_i32_0 : i32
    scf.if %2 {
      %cst_10 = arith.constant 0.000000e+00 : f32
      %12 = vector.broadcast %cst_10 : f32 to vector<128x128xf32>
      %c0_11 = arith.constant 0 : index
      %c0_12 = arith.constant 0 : index
      %13 = vector.load %arg9[%c0_11, %c0_12] : memref<128x128xf32, #tpu.memory_space<vmem>>, vector<128x128xf32>
      tpu.vector_store %arg9[%c0_11, %c0_12], %12 {strides = array<i32>} : memref<128x128xf32, #tpu.memory_space<vmem>>, vector<128x128xf32>,
    } else {
    }
    %c0 = arith.constant 0 : index
    %c0_1 = arith.constant 0 : index
    %3 = vector.load %arg9[%c0, %c0_1] : memref<128x128xf32, #tpu.memory_space<vmem>>, vector<128x128xf32>
    %c0_2 = arith.constant 0 : index
    %c0_3 = arith.constant 0 : index
    %4 = vector.load %arg2[%c0_2, %c0_3] : memref<128x128xbf16, #tpu.memory_space<vmem>>, vector<128x128xbf16>
    %c0_4 = arith.constant 0 : index
    %c0_5 = arith.constant 0 : index
    %5 = vector.load %arg3[%c0_4, %c0_5] : memref<128x128xbf16, #tpu.memory_space<vmem>>, vector<128x128xbf16>
    %cst = arith.constant dense<0.000000e+00> : vector<128x128xf32>
    %6 = tpu.matmul %4, %5, %cst {dimension_numbers = #tpu.dot_dimension_numbers<[1], [0], [0], [1], [0, 0, 1, 1], [], []>} : vector<128x128xbf16>, vector<128x128xbf16>, vector<128x128xf32> -> vector<128x128xf32>
    %7 = arith.addf %3, %6 : vector<128x128xf32>
    %c0_6 = arith.constant 0 : index
    %c0_7 = arith.constant 0 : index
    %8 = vector.load %arg9[%c0_6, %c0_7] : memref<128x128xf32, #tpu.memory_space<vmem>>, vector<128x128xf32>
    tpu.vector_store %arg9[%c0_6, %c0_7], %7 {strides = array<i32>} : memref<128x128xf32, #tpu.memory_space<vmem>>, vector<128x128xf32>,
    %c0_i32_8 = arith.constant 0 : i32
    %9 = arith.cmpi eq, %arg1, %c0_i32_8 : i32
    %10 = arith.extui %9 : i1 to i32
    %c0_i32_9 = arith.constant 0 : i32
    %11 = arith.cmpi ne, %10, %c0_i32_9 : i32
    scf.if %11 {
      %c0_10 = arith.constant 0 : index
      %c0_11 = arith.constant 0 : index
      %12 = vector.load %arg9[%c0_10, %c0_11] : memref<128x128xf32, #tpu.memory_space<vmem>>, vector<128x128xf32>
      %13 = arith.truncf %12 : vector<128x128xf32> to vector<128x128xbf16>
      %c0_12 = arith.constant 0 : index
      %c0_13 = arith.constant 0 : index
      %14 = vector.load %arg4[%c0_12, %c0_13] : memref<128x128xbf16, #tpu.memory_space<vmem>>, vector<128x128xbf16>
      %cst_14 = arith.constant dense<0.000000e+00> : vector<128x128xf32>
      %15 = tpu.matmul %13, %14, %cst_14 {dimension_numbers = #tpu.dot_dimension_numbers<[1], [0], [0], [1], [0, 0, 1, 1], [], []>} : vector<128x128xbf16>, vector<128x128xbf16>, vector<128x128xf32> -> vector<128x128xf32>
      %c0_15 = arith.constant 0 : index
      %c0_16 = arith.constant 0 : index
      %16 = vector.load %arg5[%c0_15, %c0_16] : memref<1x128xf32, #tpu.memory_space<vmem>>, vector<1x128xf32>
      %17 = vector.broadcast %16 : vector<1x128xf32> to vector<128x128xf32>
      %18 = arith.addf %15, %17 : vector<128x128xf32>
      %cst_17 = arith.constant 0.000000e+00 : f32
      %19 = vector.broadcast %cst_17 : f32 to vector<128x128xf32>
      %20 = arith.maximumf %18, %19 : vector<128x128xf32>
      %21 = arith.truncf %20 : vector<128x128xf32> to vector<128x128xbf16>
      %c0_18 = arith.constant 0 : index
      %c0_19 = arith.constant 0 : index
      %22 = vector.load %arg6[%c0_18, %c0_19] : memref<128x128xbf16, #tpu.memory_space<vmem>>, vector<128x128xbf16>
      %cst_20 = arith.constant dense<0.000000e+00> : vector<128x128xf32>
      %23 = tpu.matmul %21, %22, %cst_20 {dimension_numbers = #tpu.dot_dimension_numbers<[1], [0], [0], [1], [0, 0, 1, 1], [], []>} : vector<128x128xbf16>, vector<128x128xbf16>, vector<128x128xf32> -> vector<128x128xf32>
      %c0_21 = arith.constant 0 : index
      %c0_22 = arith.constant 0 : index
      %24 = vector.load %arg7[%c0_21, %c0_22] : memref<1x128xf32, #tpu.memory_space<vmem>>, vector<1x128xf32>
      %25 = vector.broadcast %24 : vector<1x128xf32> to vector<128x128xf32>
      %26 = arith.addf %23, %25 : vector<128x128xf32>
      %cst_23 = arith.constant 0.000000e+00 : f32
      %27 = vector.broadcast %cst_23 : f32 to vector<128x128xf32>
      %28 = arith.maximumf %26, %27 : vector<128x128xf32>
      %29 = arith.truncf %28 : vector<128x128xf32> to vector<128x128xbf16>
      %c0_24 = arith.constant 0 : index
      %c0_25 = arith.constant 0 : index
      %30 = vector.load %arg8[%c0_24, %c0_25] : memref<128x128xbf16, #tpu.memory_space<vmem>>, vector<128x128xbf16>
      tpu.vector_store %arg8[%c0_24, %c0_25], %29 {strides = array<i32>} : memref<128x128xbf16, #tpu.memory_space<vmem>>, vector<128x128xbf16>,
    } else {
    }
    return
  }
  func.func @transform_0(%arg0: i32, %arg1: i32) -> (i32, i32) {
    %c0_i32 = arith.constant 0 : i32
    return %arg0, %arg1 : i32, i32
  }
  func.func @transform_1(%arg0: i32, %arg1: i32) -> (i32, i32) {
    %c0_i32 = arith.constant 0 : i32
    %c0_i32_0 = arith.constant 0 : i32
    return %arg1, %c0_i32 : i32, i32
  }
  func.func @transform_2(%arg0: i32, %arg1: i32) -> (i32, i32) {
    %c0_i32 = arith.constant 0 : i32
    %c0_i32_0 = arith.constant 0 : i32
    %c0_i32_1 = arith.constant 0 : i32
    return %c0_i32, %c0_i32_0 : i32, i32
  }
  func.func @transform_3(%arg0: i32, %arg1: i32) -> (i32, i32) {
    %c0_i32 = arith.constant 0 : i32
    %c0_i32_0 = arith.constant 0 : i32
    %c0_i32_1 = arith.constant 0 : i32
    return %c0_i32, %c0_i32_0 : i32, i32
  }
  func.func @transform_4(%arg0: i32, %arg1: i32) -> (i32, i32) {
    %c0_i32 = arith.constant 0 : i32
    %c0_i32_0 = arith.constant 0 : i32
    %c0_i32_1 = arith.constant 0 : i32
    return %c0_i32, %c0_i32_0 : i32, i32
  }
  func.func @transform_5(%arg0: i32, %arg1: i32) -> (i32, i32) {
    %c0_i32 = arith.constant 0 : i32
    %c0_i32_0 = arith.constant 0 : i32
    %c0_i32_1 = arith.constant 0 : i32
    return %c0_i32, %c0_i32_0 : i32, i32
  }
  func.func @transform_6(%arg0: i32, %arg1: i32) -> (i32, i32) {
    %c0_i32 = arith.constant 0 : i32
    %c0_i32_0 = arith.constant 0 : i32
    return %arg0, %c0_i32 : i32, i32
  }
}

</mosaic_0001>

<llo_original>
// kernel: tpu_custom_call.1
$region0: #{tpu_custom_call.1}
  #allocation0 [shape = 'u32[]', space=smem, size = 0x4, offset = 0x4, fixed_abs, tag = 'smem constant byte address 0x4 - core index']
  #allocation1 [shape = 'u32[72,128]{1,0:T(1,128)}', space=vmem, size = 0x9000, scoped, tag = 'internal scratch']
  #allocation2 [shape = 'f32[128,128]{1,0:T(8,128)}', space=vmem, size = 0x10000, scoped, tag = 'scratch operand']
  %s0 = inlined_call_operand.hbm [shape: bf16[128,128], index: 0, kind: input, shape index: {}]
  %s1 = inlined_call_operand.hbm [shape: bf16[128,128], index: 1, kind: input, shape index: {}]
  %s2 = inlined_call_operand.hbm [shape: bf16[128,128], index: 2, kind: input, shape index: {}]
  %s3 = inlined_call_operand.vmem [shape: f32[1,128], index: 3, kind: input, shape index: {}]
  %s4 = inlined_call_operand.hbm [shape: bf16[128,128], index: 4, kind: input, shape index: {}]
  %s5 = inlined_call_operand.vmem [shape: f32[1,128], index: 5, kind: input, shape index: {}]
  %s6 = inlined_call_operand.hbm [shape: bf16[128,128], index: 6, kind: output, shape index: {}]
  %s7 = sld [smem:[#allocation0]]
  $region58: #{tpu_custom_call.1} parent=0
    _
  %s9 = ssub.s32 1, %s7
  %s10 = scalar_select 0, %s9, %s7
  $region1: #{tpu_custom_call.1} parent=0
    #allocation3 [shape = 'u8[32768]{0}', space=vmem, size = 0x8000, scoped, tag = 'input window, operand 0, single buffered']
    #allocation4 [shape = 's32[1]{0}', space=sflag, size = 0x4, scoped, tag = 'scoped memory for tpu_custom_call.1']
    #allocation5 [shape = 's32[1]{0}', space=sflag, size = 0x4, scoped, tag = 'scoped memory for tpu_custom_call.1']
    #allocation6 [shape = 'u8[32768]{0}', space=vmem, size = 0x8000, scoped, tag = 'input window, operand 1, single buffered']
    #allocation7 [shape = 's32[1]{0}', space=sflag, size = 0x4, scoped, tag = 'scoped memory for tpu_custom_call.1']
    #allocation8 [shape = 'u8[32768]{0}', space=vmem, size = 0x8000, scoped, tag = 'input window, operand 2, single buffered']
    #allocation9 [shape = 'u8[32768]{0}', space=vmem, size = 0x8000, scoped, tag = 'input window, operand 4, single buffered']
    #allocation10 [shape = 's32[1]{0}', space=sflag, size = 0x4, scoped, tag = 'scoped memory for tpu_custom_call.1']
    #allocation11 [shape = 'u8[32768]{0}', space=vmem, size = 0x8000, scoped, tag = 'output window, operand 0, single buffered']
    %11 = vsyncpa [#allocation4], 0
    %12 = vsyncpa [#allocation7], 0
    %13 = vsyncpa [#allocation10], 0
    %14 = vsyncpa [#allocation5], 0
    // Predicated region
    $region2: #{tpu_custom_call.1} parent=1 // pred_check
      _
    $region3: #{tpu_custom_call.1} parent=1 // pred_check_branch
      %16 = sbr.rel (0) target = $region5
    $region4: #{tpu_custom_call.1} parent=1 // pred_region
      %18 = vsyncadd [#allocation4], 0
      %s19 = sshll.u32 %s0, 4
      %s20 = int_to_ptr.hbm [resolvable:$true] %s19
      %s21 = sshll.u32 [#allocation3], 4
      %s22 = int_to_ptr.vmem [resolvable:$true] %s21
      %27 = dma.hbm_to_vmem [thread:$0]  %s20, 1024, %s22, [#allocation4], 64, 64, 4
    $region5: #{tpu_custom_call.1} parent=1 // pred_fallthru
      _
    // Predicated region
    $region6: #{tpu_custom_call.1} parent=1 // pred_check
      _
    $region7: #{tpu_custom_call.1} parent=1 // pred_check_branch
      %29 = sbr.rel (0) target = $region9
    $region8: #{tpu_custom_call.1} parent=1 // pred_region
      %31 = vsyncadd [#allocation7], 0
      %s32 = sshll.u32 %s1, 4
      %s33 = int_to_ptr.hbm [resolvable:$true] %s32
      %s34 = sshll.u32 [#allocation6], 4
      %s35 = int_to_ptr.vmem [resolvable:$true] %s34
      %40 = dma.hbm_to_vmem [thread:$0]  %s33, 1024, %s35, [#allocation7], 64, 64, 4
    $region9: #{tpu_custom_call.1} parent=1 // pred_fallthru
      _
    // Predicated region
    $region10: #{tpu_custom_call.1} parent=1 // pred_check
      _
    $region11: #{tpu_custom_call.1} parent=1 // pred_check_branch
      %42 = sbr.rel (0) target = $region13
    $region12: #{tpu_custom_call.1} parent=1 // pred_region
      %44 = vsyncadd [#allocation7], 0
      %s45 = sshll.u32 %s2, 4
      %s46 = int_to_ptr.hbm [resolvable:$true] %s45
      %s47 = sshll.u32 [#allocation8], 4
      %s48 = int_to_ptr.vmem [resolvable:$true] %s47
      %53 = dma.hbm_to_vmem [thread:$0]  %s46, 1024, %s48, [#allocation7], 64, 64, 4
    $region13: #{tpu_custom_call.1} parent=1 // pred_fallthru
      _
    // Predicated region
    $region14: #{tpu_custom_call.1} parent=1 // pred_check
      _
    $region15: #{tpu_custom_call.1} parent=1 // pred_check_branch
      %55 = sbr.rel (0) target = $region17
    $region16: #{tpu_custom_call.1} parent=1 // pred_region
      _
    $region17: #{tpu_custom_call.1} parent=1 // pred_fallthru
      _
    // Predicated region
    $region18: #{tpu_custom_call.1} parent=1 // pred_check
      _
    $region19: #{tpu_custom_call.1} parent=1 // pred_check_branch
      %57 = sbr.rel (0) target = $region21
    $region20: #{tpu_custom_call.1} parent=1 // pred_region
      %59 = vsyncadd [#allocation10], 0
      %s60 = sshll.u32 %s4, 4
      %s61 = int_to_ptr.hbm [resolvable:$true] %s60
      %s62 = sshll.u32 [#allocation9], 4
      %s63 = int_to_ptr.vmem [resolvable:$true] %s62
      %68 = dma.hbm_to_vmem [thread:$0]  %s61, 1024, %s63, [#allocation10], 64, 64, 4
    $region21: #{tpu_custom_call.1} parent=1 // pred_fallthru
      _
    // Predicated region
    $region22: #{tpu_custom_call.1} parent=1 // pred_check
      _
    $region23: #{tpu_custom_call.1} parent=1 // pred_check_branch
      %70 = sbr.rel (0) target = $region25
    $region24: #{tpu_custom_call.1} parent=1 // pred_region
      _
    $region25: #{tpu_custom_call.1} parent=1 // pred_fallthru
      _
    // Predicated region
    $region26: #{tpu_custom_call.1} parent=1 // pred_check
      _
    $region27: #{tpu_custom_call.1} parent=1 // pred_check_branch
      %72 = sbr.rel (0) target = $region29
    $region28: #{tpu_custom_call.1} parent=1 // pred_region
      %74 = dma.done [#allocation4], 1024
    $region29: #{tpu_custom_call.1} parent=1 // pred_fallthru
      _
    // Predicated region
    $region30: #{tpu_custom_call.1} parent=1 // pred_check
      _
    $region31: #{tpu_custom_call.1} parent=1 // pred_check_branch
      %76 = sbr.rel (0) target = $region33
    $region32: #{tpu_custom_call.1} parent=1 // pred_region
      %78 = dma.done [#allocation7], 1024
    $region33: #{tpu_custom_call.1} parent=1 // pred_fallthru
      _
    // Predicated region
    $region34: #{tpu_custom_call.1} parent=1 // pred_check
      _
    $region35: #{tpu_custom_call.1} parent=1 // pred_check_branch
      %80 = sbr.rel (0) target = $region37
    $region36: #{tpu_custom_call.1} parent=1 // pred_region
      %82 = dma.done [#allocation7], 1024
    $region37: #{tpu_custom_call.1} parent=1 // pred_fallthru
      _
    // Predicated region
    $region38: #{tpu_custom_call.1} parent=1 // pred_check
      _
    $region39: #{tpu_custom_call.1} parent=1 // pred_check_branch
      %84 = sbr.rel (0) target = $region41
    $region40: #{tpu_custom_call.1} parent=1 // pred_region
      %86 = dma.done [#allocation10], 1024
    $region41: #{tpu_custom_call.1} parent=1 // pred_fallthru
      _
    %p87 = scmp.eq.s32.totalorder 0, 0
    // Predicated region
    $region42: #{tpu_custom_call.1} parent=1 // pred_check
      %p88 = pneg %p87
    $region43: #{tpu_custom_call.1} parent=1 // pred_check_branch
      %90 = sbr.rel (%p88) target = $region45
    $region44: #{tpu_custom_call.1} parent=1 // pred_region
      %91 = vst [vmem:[#allocation2] sm:$0xff] 0.0
      %92 = vst [vmem:[#allocation2 + $0x8] sm:$0xff] 0.0
      %93 = vst [vmem:[#allocation2 + $0x10] sm:$0xff] 0.0
      %94 = vst [vmem:[#allocation2 + $0x18] sm:$0xff] 0.0
      %95 = vst [vmem:[#allocation2 + $0x20] sm:$0xff] 0.0
      %96 = vst [vmem:[#allocation2 + $0x28] sm:$0xff] 0.0
      %97 = vst [vmem:[#allocation2 + $0x30] sm:$0xff] 0.0
      %98 = vst [vmem:[#allocation2 + $0x38] sm:$0xff] 0.0
      %99 = vst [vmem:[#allocation2 + $0x40] sm:$0xff] 0.0
      %100 = vst [vmem:[#allocation2 + $0x48] sm:$0xff] 0.0
      %101 = vst [vmem:[#allocation2 + $0x50] sm:$0xff] 0.0
      %102 = vst [vmem:[#allocation2 + $0x58] sm:$0xff] 0.0
      %103 = vst [vmem:[#allocation2 + $0x60] sm:$0xff] 0.0
      %104 = vst [vmem:[#allocation2 + $0x68] sm:$0xff] 0.0
      %105 = vst [vmem:[#allocation2 + $0x70] sm:$0xff] 0.0
      %106 = vst [vmem:[#allocation2 + $0x78] sm:$0xff] 0.0
    $region45: #{tpu_custom_call.1} parent=1 // pred_fallthru
      _
    %v107 = vld [vmem:[#allocation2] sm:$0xff]
    %v108 = vld [vmem:[#allocation2 + $0x8] sm:$0xff]
    %v109 = vld [vmem:[#allocation2 + $0x10] sm:$0xff]
    %v110 = vld [vmem:[#allocation2 + $0x18] sm:$0xff]
    %v111 = vld [vmem:[#allocation2 + $0x20] sm:$0xff]
    %v112 = vld [vmem:[#allocation2 + $0x28] sm:$0xff]
    %v113 = vld [vmem:[#allocation2 + $0x30] sm:$0xff]
    %v114 = vld [vmem:[#allocation2 + $0x38] sm:$0xff]
    %v115 = vld [vmem:[#allocation2 + $0x40] sm:$0xff]
    %v116 = vld [vmem:[#allocation2 + $0x48] sm:$0xff]
    %v117 = vld [vmem:[#allocation2 + $0x50] sm:$0xff]
    %v118 = vld [vmem:[#allocation2 + $0x58] sm:$0xff]
    %v119 = vld [vmem:[#allocation2 + $0x60] sm:$0xff]
    %v120 = vld [vmem:[#allocation2 + $0x68] sm:$0xff]
    %v121 = vld [vmem:[#allocation2 + $0x70] sm:$0xff]
    %v122 = vld [vmem:[#allocation2 + $0x78] sm:$0xff]
    %v123 = vld [vmem:[#allocation3] sm:$0xf]
    %v124 = vld [vmem:[#allocation3 + $0x4] sm:$0xf]
    %v125 = vld [vmem:[#allocation3 + $0x8] sm:$0xf]
    %v126 = vld [vmem:[#allocation3 + $0xc] sm:$0xf]
    %v127 = vld [vmem:[#allocation3 + $0x10] sm:$0xf]
    %v128 = vld [vmem:[#allocation3 + $0x14] sm:$0xf]
    %v129 = vld [vmem:[#allocation3 + $0x18] sm:$0xf]
    %v130 = vld [vmem:[#allocation3 + $0x1c] sm:$0xf]
    %v131 = vld [vmem:[#allocation3 + $0x20] sm:$0xf]
    %v132 = vld [vmem:[#allocation3 + $0x24] sm:$0xf]
    %v133 = vld [vmem:[#allocation3 + $0x28] sm:$0xf]
    %v134 = vld [vmem:[#allocation3 + $0x2c] sm:$0xf]
    %v135 = vld [vmem:[#allocation3 + $0x30] sm:$0xf]
    %v136 = vld [vmem:[#allocation3 + $0x34] sm:$0xf]
    %v137 = vld [vmem:[#allocation3 + $0x38] sm:$0xf]
    %v138 = vld [vmem:[#allocation3 + $0x3c] sm:$0xf]
    %v139 = vld [vmem:[#allocation6] sm:$0xf]
    %v140 = vld [vmem:[#allocation6 + $0x4] sm:$0xf]
    %v141 = vld [vmem:[#allocation6 + $0x8] sm:$0xf]
    %v142 = vld [vmem:[#allocation6 + $0xc] sm:$0xf]
    %v143 = vld [vmem:[#allocation6 + $0x10] sm:$0xf]
    %v144 = vld [vmem:[#allocation6 + $0x14] sm:$0xf]
    %v145 = vld [vmem:[#allocation6 + $0x18] sm:$0xf]
    %v146 = vld [vmem:[#allocation6 + $0x1c] sm:$0xf]
    %v147 = vld [vmem:[#allocation6 + $0x20] sm:$0xf]
    %v148 = vld [vmem:[#allocation6 + $0x24] sm:$0xf]
    %v149 = vld [vmem:[#allocation6 + $0x28] sm:$0xf]
    %v150 = vld [vmem:[#allocation6 + $0x2c] sm:$0xf]
    %v151 = vld [vmem:[#allocation6 + $0x30] sm:$0xf]
    %v152 = vld [vmem:[#allocation6 + $0x34] sm:$0xf]
    %v153 = vld [vmem:[#allocation6 + $0x38] sm:$0xf]
    %v154 = vld [vmem:[#allocation6 + $0x3c] sm:$0xf]
    %v171 = vunpack.c.l.b16 %v123
    %v172 = vunpack.c.l.b16 %v124
    %v173 = vunpack.c.l.b16 %v125
    %v174 = vunpack.c.l.b16 %v126
    %v175 = vunpack.c.l.b16 %v127
    %v176 = vunpack.c.l.b16 %v128
    %v177 = vunpack.c.l.b16 %v129
    %v178 = vunpack.c.l.b16 %v130
    %v179 = vunpack.c.l.b16 %v131
    %v180 = vunpack.c.l.b16 %v132
    %v181 = vunpack.c.l.b16 %v133
    %v182 = vunpack.c.l.b16 %v134
    %v183 = vunpack.c.l.b16 %v135
    %v184 = vunpack.c.l.b16 %v136
    %v185 = vunpack.c.l.b16 %v137
    %v186 = vunpack.c.l.b16 %v138
    %v187 = vpack.c.b16 %v172, %v171
    %v188 = vpack.c.b16 %v174, %v173
    %v189 = vpack.c.b16 %v176, %v175
    %v190 = vpack.c.b16 %v178, %v177
    %v191 = vpack.c.b16 %v180, %v179
    %v192 = vpack.c.b16 %v182, %v181
    %v193 = vpack.c.b16 %v184, %v183
    %v194 = vpack.c.b16 %v186, %v185
    %v219 = vunpack.c.l.b16 %v139
    %v220 = vunpack.c.l.b16 %v140
    %v221 = vunpack.c.l.b16 %v141
    %v222 = vunpack.c.l.b16 %v142
    %v223 = vunpack.c.l.b16 %v143
    %v224 = vunpack.c.l.b16 %v144
    %v225 = vunpack.c.l.b16 %v145
    %v226 = vunpack.c.l.b16 %v146
    %v227 = vunpack.c.l.b16 %v147
    %v228 = vunpack.c.l.b16 %v148
    %v229 = vunpack.c.l.b16 %v149
    %v230 = vunpack.c.l.b16 %v150
    %v231 = vunpack.c.l.b16 %v151
    %v232 = vunpack.c.l.b16 %v152
    %v233 = vunpack.c.l.b16 %v153
    %v234 = vunpack.c.l.b16 %v154
    %v235 = vpack.c.b16 %v220, %v219
    %v236 = vpack.c.b16 %v222, %v221
    %v237 = vpack.c.b16 %v224, %v223
    %v238 = vpack.c.b16 %v226, %v225
    %v239 = vpack.c.b16 %v228, %v227
    %v240 = vpack.c.b16 %v230, %v229
    %v241 = vpack.c.b16 %v232, %v231
    %v242 = vpack.c.b16 %v234, %v233
    %251 = vmatpush.bf16.msra.mxu0 %v242
    %252 = vmatpush.bf16.msra.mxu0 %v241
    %253 = vmatpush.bf16.msra.mxu0 %v240
    %254 = vmatpush.bf16.msra.mxu0 %v239
    %255 = vmatpush.bf16.msra.mxu0 %v238
    %256 = vmatpush.bf16.msra.mxu0 %v237
    %257 = vmatpush.bf16.msra.mxu0 %v236
    %258 = vmatpush.bf16.msra.mxu0 %v235
    %259 = vmatmul.bf16.gmra.mxu0 %v187
    %v260 = vpop.f32.mrf.mxu0
    %v261 = vadd.f32 0.0, %v260
    %v262 = vpop.f32.mrf.mxu0
    %v263 = vadd.f32 0.0, %v262
    %264 = vmatmul.bf16.gmra.mxu0 %v188
    %v265 = vpop.f32.mrf.mxu0
    %v266 = vadd.f32 0.0, %v265
    %v267 = vpop.f32.mrf.mxu0
    %v268 = vadd.f32 0.0, %v267
    %269 = vmatmul.bf16.gmra.mxu0 %v189
    %v270 = vpop.f32.mrf.mxu0
    %v271 = vadd.f32 0.0, %v270
    %v272 = vpop.f32.mrf.mxu0
    %v273 = vadd.f32 0.0, %v272
    %274 = vmatmul.bf16.gmra.mxu0 %v190
    %v275 = vpop.f32.mrf.mxu0
    %v276 = vadd.f32 0.0, %v275
    %v277 = vpop.f32.mrf.mxu0
    %v278 = vadd.f32 0.0, %v277
    %279 = vmatmul.bf16.gmra.mxu0 %v191
    %v280 = vpop.f32.mrf.mxu0
    %v281 = vadd.f32 0.0, %v280
    %v282 = vpop.f32.mrf.mxu0
    %v283 = vadd.f32 0.0, %v282
    %284 = vmatmul.bf16.gmra.mxu0 %v192
    %v285 = vpop.f32.mrf.mxu0
    %v286 = vadd.f32 0.0, %v285
    %v287 = vpop.f32.mrf.mxu0
    %v288 = vadd.f32 0.0, %v287
    %289 = vmatmul.bf16.gmra.mxu0 %v193
    %v290 = vpop.f32.mrf.mxu0
    %v291 = vadd.f32 0.0, %v290
    %v292 = vpop.f32.mrf.mxu0
    %v293 = vadd.f32 0.0, %v292
    %294 = vmatmul.bf16.gmra.mxu0 %v194
    %v295 = vpop.f32.mrf.mxu0
    %v296 = vadd.f32 0.0, %v295
    %v297 = vpop.f32.mrf.mxu0
    %v298 = vadd.f32 0.0, %v297
    %299 = vdwg.mxu0
    %v300 = vadd.f32 %v107, %v261
    %v301 = vadd.f32 %v108, %v263
    %v302 = vadd.f32 %v109, %v266
    %v303 = vadd.f32 %v110, %v268
    %v304 = vadd.f32 %v111, %v271
    %v305 = vadd.f32 %v112, %v273
    %v306 = vadd.f32 %v113, %v276
    %v307 = vadd.f32 %v114, %v278
    %v308 = vadd.f32 %v115, %v281
    %v309 = vadd.f32 %v116, %v283
    %v310 = vadd.f32 %v117, %v286
    %v311 = vadd.f32 %v118, %v288
    %v312 = vadd.f32 %v119, %v291
    %v313 = vadd.f32 %v120, %v293
    %v314 = vadd.f32 %v121, %v296
    %v315 = vadd.f32 %v122, %v298
    %316 = vst [vmem:[#allocation2] sm:$0xff] %v300
    %317 = vst [vmem:[#allocation2 + $0x8] sm:$0xff] %v301
    %318 = vst [vmem:[#allocation2 + $0x10] sm:$0xff] %v302
    %319 = vst [vmem:[#allocation2 + $0x18] sm:$0xff] %v303
    %320 = vst [vmem:[#allocation2 + $0x20] sm:$0xff] %v304
    %321 = vst [vmem:[#allocation2 + $0x28] sm:$0xff] %v305
    %322 = vst [vmem:[#allocation2 + $0x30] sm:$0xff] %v306
    %323 = vst [vmem:[#allocation2 + $0x38] sm:$0xff] %v307
    %324 = vst [vmem:[#allocation2 + $0x40] sm:$0xff] %v308
    %325 = vst [vmem:[#allocation2 + $0x48] sm:$0xff] %v309
    %326 = vst [vmem:[#allocation2 + $0x50] sm:$0xff] %v310
    %327 = vst [vmem:[#allocation2 + $0x58] sm:$0xff] %v311
    %328 = vst [vmem:[#allocation2 + $0x60] sm:$0xff] %v312
    %329 = vst [vmem:[#allocation2 + $0x68] sm:$0xff] %v313
    %330 = vst [vmem:[#allocation2 + $0x70] sm:$0xff] %v314
    %331 = vst [vmem:[#allocation2 + $0x78] sm:$0xff] %v315
    // Predicated region
    $region46: #{tpu_custom_call.1} parent=1 // pred_check
      %p332 = pneg %p87
    $region47: #{tpu_custom_call.1} parent=1 // pred_check_branch
      %334 = sbr.rel (%p332) target = $region49
    $region48: #{tpu_custom_call.1} parent=1 // pred_region
      %v335 = vld [vmem:[#allocation2] sm:$0xff]
      %v336 = vld [vmem:[#allocation2 + $0x8] sm:$0xff]
      %v337 = vld [vmem:[#allocation2 + $0x10] sm:$0xff]
      %v338 = vld [vmem:[#allocation2 + $0x18] sm:$0xff]
      %v339 = vld [vmem:[#allocation2 + $0x20] sm:$0xff]
      %v340 = vld [vmem:[#allocation2 + $0x28] sm:$0xff]
      %v341 = vld [vmem:[#allocation2 + $0x30] sm:$0xff]
      %v342 = vld [vmem:[#allocation2 + $0x38] sm:$0xff]
      %v343 = vld [vmem:[#allocation2 + $0x40] sm:$0xff]
      %v344 = vld [vmem:[#allocation2 + $0x48] sm:$0xff]
      %v345 = vld [vmem:[#allocation2 + $0x50] sm:$0xff]
      %v346 = vld [vmem:[#allocation2 + $0x58] sm:$0xff]
      %v347 = vld [vmem:[#allocation2 + $0x60] sm:$0xff]
      %v348 = vld [vmem:[#allocation2 + $0x68] sm:$0xff]
      %v349 = vld [vmem:[#allocation2 + $0x70] sm:$0xff]
      %v350 = vld [vmem:[#allocation2 + $0x78] sm:$0xff]
      %v351 = vpack.c.bf16 %v336, %v335
      %v352 = vpack.c.bf16 %v338, %v337
      %v353 = vpack.c.bf16 %v340, %v339
      %v354 = vpack.c.bf16 %v342, %v341
      %v355 = vpack.c.bf16 %v344, %v343
      %v356 = vpack.c.bf16 %v346, %v345
      %v357 = vpack.c.bf16 %v348, %v347
      %v358 = vpack.c.bf16 %v350, %v349
      %v359 = vld [vmem:[#allocation8] sm:$0xf]
      %v360 = vld [vmem:[#allocation8 + $0x4] sm:$0xf]
      %v361 = vld [vmem:[#allocation8 + $0x8] sm:$0xf]
      %v362 = vld [vmem:[#allocation8 + $0xc] sm:$0xf]
      %v363 = vld [vmem:[#allocation8 + $0x10] sm:$0xf]
      %v364 = vld [vmem:[#allocation8 + $0x14] sm:$0xf]
      %v365 = vld [vmem:[#allocation8 + $0x18] sm:$0xf]
      %v366 = vld [vmem:[#allocation8 + $0x1c] sm:$0xf]
      %v367 = vld [vmem:[#allocation8 + $0x20] sm:$0xf]
      %v368 = vld [vmem:[#allocation8 + $0x24] sm:$0xf]
      %v369 = vld [vmem:[#allocation8 + $0x28] sm:$0xf]
      %v370 = vld [vmem:[#allocation8 + $0x2c] sm:$0xf]
      %v371 = vld [vmem:[#allocation8 + $0x30] sm:$0xf]
      %v372 = vld [vmem:[#allocation8 + $0x34] sm:$0xf]
      %v373 = vld [vmem:[#allocation8 + $0x38] sm:$0xf]
      %v374 = vld [vmem:[#allocation8 + $0x3c] sm:$0xf]
      %v375 = vld [vmem:[%s3] sm:$0x1]
      %v377 = vperm.slane %v375, 0
      %v395 = vunpack.c.l.b16 %v359
      %v396 = vunpack.c.l.b16 %v360
      %v397 = vunpack.c.l.b16 %v361
      %v398 = vunpack.c.l.b16 %v362
      %v399 = vunpack.c.l.b16 %v363
      %v400 = vunpack.c.l.b16 %v364
      %v401 = vunpack.c.l.b16 %v365
      %v402 = vunpack.c.l.b16 %v366
      %v403 = vunpack.c.l.b16 %v367
      %v404 = vunpack.c.l.b16 %v368
      %v405 = vunpack.c.l.b16 %v369
      %v406 = vunpack.c.l.b16 %v370
      %v407 = vunpack.c.l.b16 %v371
      %v408 = vunpack.c.l.b16 %v372
      %v409 = vunpack.c.l.b16 %v373
      %v410 = vunpack.c.l.b16 %v374
      %v411 = vpack.c.b16 %v396, %v395
      %v412 = vpack.c.b16 %v398, %v397
      %v413 = vpack.c.b16 %v400, %v399
      %v414 = vpack.c.b16 %v402, %v401
      %v415 = vpack.c.b16 %v404, %v403
      %v416 = vpack.c.b16 %v406, %v405
      %v417 = vpack.c.b16 %v408, %v407
      %v418 = vpack.c.b16 %v410, %v409
      %427 = vmatpush.bf16.msra.mxu0 %v418
      %428 = vmatpush.bf16.msra.mxu0 %v417
      %429 = vmatpush.bf16.msra.mxu0 %v416
      %430 = vmatpush.bf16.msra.mxu0 %v415
      %431 = vmatpush.bf16.msra.mxu0 %v414
      %432 = vmatpush.bf16.msra.mxu0 %v413
      %433 = vmatpush.bf16.msra.mxu0 %v412
      %434 = vmatpush.bf16.msra.mxu0 %v411
      %435 = vmatmul.bf16.gmra.mxu0 %v351
      %v436 = vpop.f32.mrf.mxu0
      %v437 = vadd.f32 %v377, %v436
      %v438 = vpop.f32.mrf.mxu0
      %v439 = vadd.f32 %v377, %v438
      %440 = vmatmul.bf16.gmra.mxu0 %v352
      %v441 = vpop.f32.mrf.mxu0
      %v442 = vadd.f32 %v377, %v441
      %v443 = vpop.f32.mrf.mxu0
      %v444 = vadd.f32 %v377, %v443
      %445 = vmatmul.bf16.gmra.mxu0 %v353
      %v446 = vpop.f32.mrf.mxu0
      %v447 = vadd.f32 %v377, %v446
      %v448 = vpop.f32.mrf.mxu0
      %v449 = vadd.f32 %v377, %v448
      %450 = vmatmul.bf16.gmra.mxu0 %v354
      %v451 = vpop.f32.mrf.mxu0
      %v452 = vadd.f32 %v377, %v451
      %v453 = vpop.f32.mrf.mxu0
      %v454 = vadd.f32 %v377, %v453
      %455 = vmatmul.bf16.gmra.mxu0 %v355
      %v456 = vpop.f32.mrf.mxu0
      %v457 = vadd.f32 %v377, %v456
      %v458 = vpop.f32.mrf.mxu0
      %v459 = vadd.f32 %v377, %v458
      %460 = vmatmul.bf16.gmra.mxu0 %v356
      %v461 = vpop.f32.mrf.mxu0
      %v462 = vadd.f32 %v377, %v461
      %v463 = vpop.f32.mrf.mxu0
      %v464 = vadd.f32 %v377, %v463
      %465 = vmatmul.bf16.gmra.mxu0 %v357
      %v466 = vpop.f32.mrf.mxu0
      %v467 = vadd.f32 %v377, %v466
      %v468 = vpop.f32.mrf.mxu0
      %v469 = vadd.f32 %v377, %v468
      %470 = vmatmul.bf16.gmra.mxu0 %v358
      %v471 = vpop.f32.mrf.mxu0
      %v472 = vadd.f32 %v377, %v471
      %v473 = vpop.f32.mrf.mxu0
      %v474 = vadd.f32 %v377, %v473
      %475 = vdwg.mxu0
      %v476 = vmax.f32 %v437, 0.0
      %v477 = vmax.f32 %v439, 0.0
      %v478 = vmax.f32 %v442, 0.0
      %v479 = vmax.f32 %v444, 0.0
      %v480 = vmax.f32 %v447, 0.0
      %v481 = vmax.f32 %v449, 0.0
      %v482 = vmax.f32 %v452, 0.0
      %v483 = vmax.f32 %v454, 0.0
      %v484 = vmax.f32 %v457, 0.0
      %v485 = vmax.f32 %v459, 0.0
      %v486 = vmax.f32 %v462, 0.0
      %v487 = vmax.f32 %v464, 0.0
      %v488 = vmax.f32 %v467, 0.0
      %v489 = vmax.f32 %v469, 0.0
      %v490 = vmax.f32 %v472, 0.0
      %v491 = vmax.f32 %v474, 0.0
      %v492 = vpack.c.bf16 %v477, %v476
      %v493 = vpack.c.bf16 %v479, %v478
      %v494 = vpack.c.bf16 %v481, %v480
      %v495 = vpack.c.bf16 %v483, %v482
      %v496 = vpack.c.bf16 %v485, %v484
      %v497 = vpack.c.bf16 %v487, %v486
      %v498 = vpack.c.bf16 %v489, %v488
      %v499 = vpack.c.bf16 %v491, %v490
      %v500 = vld [vmem:[#allocation9] sm:$0xf]
      %v501 = vld [vmem:[#allocation9 + $0x4] sm:$0xf]
      %v502 = vld [vmem:[#allocation9 + $0x8] sm:$0xf]
      %v503 = vld [vmem:[#allocation9 + $0xc] sm:$0xf]
      %v504 = vld [vmem:[#allocation9 + $0x10] sm:$0xf]
      %v505 = vld [vmem:[#allocation9 + $0x14] sm:$0xf]
      %v506 = vld [vmem:[#allocation9 + $0x18] sm:$0xf]
      %v507 = vld [vmem:[#allocation9 + $0x1c] sm:$0xf]
      %v508 = vld [vmem:[#allocation9 + $0x20] sm:$0xf]
      %v509 = vld [vmem:[#allocation9 + $0x24] sm:$0xf]
      %v510 = vld [vmem:[#allocation9 + $0x28] sm:$0xf]
      %v511 = vld [vmem:[#allocation9 + $0x2c] sm:$0xf]
      %v512 = vld [vmem:[#allocation9 + $0x30] sm:$0xf]
      %v513 = vld [vmem:[#allocation9 + $0x34] sm:$0xf]
      %v514 = vld [vmem:[#allocation9 + $0x38] sm:$0xf]
      %v515 = vld [vmem:[#allocation9 + $0x3c] sm:$0xf]
      %v516 = vld [vmem:[%s5] sm:$0x1]
      %v518 = vperm.slane %v516, 0
      %v536 = vunpack.c.l.b16 %v500
      %v537 = vunpack.c.l.b16 %v501
      %v538 = vunpack.c.l.b16 %v502
      %v539 = vunpack.c.l.b16 %v503
      %v540 = vunpack.c.l.b16 %v504
      %v541 = vunpack.c.l.b16 %v505
      %v542 = vunpack.c.l.b16 %v506
      %v543 = vunpack.c.l.b16 %v507
      %v544 = vunpack.c.l.b16 %v508
      %v545 = vunpack.c.l.b16 %v509
      %v546 = vunpack.c.l.b16 %v510
      %v547 = vunpack.c.l.b16 %v511
      %v548 = vunpack.c.l.b16 %v512
      %v549 = vunpack.c.l.b16 %v513
      %v550 = vunpack.c.l.b16 %v514
      %v551 = vunpack.c.l.b16 %v515
      %v552 = vpack.c.b16 %v537, %v536
      %v553 = vpack.c.b16 %v539, %v538
      %v554 = vpack.c.b16 %v541, %v540
      %v555 = vpack.c.b16 %v543, %v542
      %v556 = vpack.c.b16 %v545, %v544
      %v557 = vpack.c.b16 %v547, %v546
      %v558 = vpack.c.b16 %v549, %v548
      %v559 = vpack.c.b16 %v551, %v550
      %568 = vmatpush.bf16.msra.mxu0 %v559
      %569 = vmatpush.bf16.msra.mxu0 %v558
      %570 = vmatpush.bf16.msra.mxu0 %v557
      %571 = vmatpush.bf16.msra.mxu0 %v556
      %572 = vmatpush.bf16.msra.mxu0 %v555
      %573 = vmatpush.bf16.msra.mxu0 %v554
      %574 = vmatpush.bf16.msra.mxu0 %v553
      %575 = vmatpush.bf16.msra.mxu0 %v552
      %576 = vmatmul.bf16.gmra.mxu0 %v492
      %v577 = vpop.f32.mrf.mxu0
      %v578 = vadd.f32 %v518, %v577
      %v579 = vpop.f32.mrf.mxu0
      %v580 = vadd.f32 %v518, %v579
      %581 = vmatmul.bf16.gmra.mxu0 %v493
      %v582 = vpop.f32.mrf.mxu0
      %v583 = vadd.f32 %v518, %v582
      %v584 = vpop.f32.mrf.mxu0
      %v585 = vadd.f32 %v518, %v584
      %586 = vmatmul.bf16.gmra.mxu0 %v494
      %v587 = vpop.f32.mrf.mxu0
      %v588 = vadd.f32 %v518, %v587
      %v589 = vpop.f32.mrf.mxu0
      %v590 = vadd.f32 %v518, %v589
      %591 = vmatmul.bf16.gmra.mxu0 %v495
      %v592 = vpop.f32.mrf.mxu0
      %v593 = vadd.f32 %v518, %v592
      %v594 = vpop.f32.mrf.mxu0
      %v595 = vadd.f32 %v518, %v594
      %596 = vmatmul.bf16.gmra.mxu0 %v496
      %v597 = vpop.f32.mrf.mxu0
      %v598 = vadd.f32 %v518, %v597
      %v599 = vpop.f32.mrf.mxu0
      %v600 = vadd.f32 %v518, %v599
      %601 = vmatmul.bf16.gmra.mxu0 %v497
      %v602 = vpop.f32.mrf.mxu0
      %v603 = vadd.f32 %v518, %v602
      %v604 = vpop.f32.mrf.mxu0
      %v605 = vadd.f32 %v518, %v604
      %606 = vmatmul.bf16.gmra.mxu0 %v498
      %v607 = vpop.f32.mrf.mxu0
      %v608 = vadd.f32 %v518, %v607
      %v609 = vpop.f32.mrf.mxu0
      %v610 = vadd.f32 %v518, %v609
      %611 = vmatmul.bf16.gmra.mxu0 %v499
      %v612 = vpop.f32.mrf.mxu0
      %v613 = vadd.f32 %v518, %v612
      %v614 = vpop.f32.mrf.mxu0
      %v615 = vadd.f32 %v518, %v614
      %616 = vdwg.mxu0
      %v617 = vmax.f32 %v578, 0.0
      %v618 = vmax.f32 %v580, 0.0
      %v619 = vmax.f32 %v583, 0.0
      %v620 = vmax.f32 %v585, 0.0
      %v621 = vmax.f32 %v588, 0.0
      %v622 = vmax.f32 %v590, 0.0
      %v623 = vmax.f32 %v593, 0.0
      %v624 = vmax.f32 %v595, 0.0
      %v625 = vmax.f32 %v598, 0.0
      %v626 = vmax.f32 %v600, 0.0
      %v627 = vmax.f32 %v603, 0.0
      %v628 = vmax.f32 %v605, 0.0
      %v629 = vmax.f32 %v608, 0.0
      %v630 = vmax.f32 %v610, 0.0
      %v631 = vmax.f32 %v613, 0.0
      %v632 = vmax.f32 %v615, 0.0
      %v633 = vpack.c.bf16 %v617, %v617
      %v634 = vpack.c.bf16 %v618, %v618
      %v635 = vpack.c.bf16 %v619, %v619
      %v636 = vpack.c.bf16 %v620, %v620
      %v637 = vpack.c.bf16 %v621, %v621
      %v638 = vpack.c.bf16 %v622, %v622
      %v639 = vpack.c.bf16 %v623, %v623
      %v640 = vpack.c.bf16 %v624, %v624
      %v641 = vpack.c.bf16 %v625, %v625
      %v642 = vpack.c.bf16 %v626, %v626
      %v643 = vpack.c.bf16 %v627, %v627
      %v644 = vpack.c.bf16 %v628, %v628
      %v645 = vpack.c.bf16 %v629, %v629
      %v646 = vpack.c.bf16 %v630, %v630
      %v647 = vpack.c.bf16 %v631, %v631
      %v648 = vpack.c.bf16 %v632, %v632
      %649 = vst [vmem:[#allocation11] sm:$0xf] %v633
      %650 = vst [vmem:[#allocation11 + $0x4] sm:$0xf] %v634
      %651 = vst [vmem:[#allocation11 + $0x8] sm:$0xf] %v635
      %652 = vst [vmem:[#allocation11 + $0xc] sm:$0xf] %v636
      %653 = vst [vmem:[#allocation11 + $0x10] sm:$0xf] %v637
      %654 = vst [vmem:[#allocation11 + $0x14] sm:$0xf] %v638
      %655 = vst [vmem:[#allocation11 + $0x18] sm:$0xf] %v639
      %656 = vst [vmem:[#allocation11 + $0x1c] sm:$0xf] %v640
      %657 = vst [vmem:[#allocation11 + $0x20] sm:$0xf] %v641
      %658 = vst [vmem:[#allocation11 + $0x24] sm:$0xf] %v642
      %659 = vst [vmem:[#allocation11 + $0x28] sm:$0xf] %v643
      %660 = vst [vmem:[#allocation11 + $0x2c] sm:$0xf] %v644
      %661 = vst [vmem:[#allocation11 + $0x30] sm:$0xf] %v645
      %662 = vst [vmem:[#allocation11 + $0x34] sm:$0xf] %v646
      %663 = vst [vmem:[#allocation11 + $0x38] sm:$0xf] %v647
      %664 = vst [vmem:[#allocation11 + $0x3c] sm:$0xf] %v648
    $region49: #{tpu_custom_call.1} parent=1 // pred_fallthru
      _
    // Predicated region
    $region50: #{tpu_custom_call.1} parent=1 // pred_check
      _
    $region51: #{tpu_custom_call.1} parent=1 // pred_check_branch
      %666 = sbr.rel (0) target = $region53
    $region52: #{tpu_custom_call.1} parent=1 // pred_region
      %668 = vsyncadd [#allocation5], 0
      %s669 = sshll.u32 [#allocation11], 4
      %s670 = int_to_ptr.vmem [resolvable:$true] %s669
      %s671 = sshll.u32 %s6, 4
      %s672 = int_to_ptr.hbm [resolvable:$true] %s671
      %677 = dma.vmem_to_hbm [thread:$0]  %s670, 1024, %s672, [#allocation5], 64, 64, 4
    $region53: #{tpu_custom_call.1} parent=1 // pred_fallthru
      _
    // Predicated region
    $region54: #{tpu_custom_call.1} parent=1 // pred_check
      _
    $region55: #{tpu_custom_call.1} parent=1 // pred_check_branch
      %679 = sbr.rel (0) target = $region57
    $region56: #{tpu_custom_call.1} parent=1 // pred_region
      %681 = dma.done [#allocation5], 1024
    $region57: #{tpu_custom_call.1} parent=1 // pred_fallthru
      _
    %682 = vsyncpa [#allocation4], 1
    %683 = vsyncpa [#allocation7], 1
    %684 = vsyncpa [#allocation10], 1
    %685 = vsyncpa [#allocation5], 1

</llo_original>
